<compile_context>
chip_gen: v5e
topology: v5e:2x2
jax: 0.10.0
libtpu: 0.0.40
codegen_flags: <defaults>
</compile_context>

<pallas_src>
import functools

import jax
import jax.numpy as jnp
from jax import lax
from jax.experimental import pallas as pl
from jax.experimental.pallas import tpu as pltpu


_CHUNK = 256      # inner batch sub-tile (sublane axis); keeps intermediates in vregs
_BIAS_ROWS = 24   # bias pack layout: b1 @ row 0, b2 @ row 8, b3 @ row 16 (8-aligned)


def _ceil_div(a, b):
    return -(-a // b)


def _round_up(n, m):
    return _ceil_div(n, m) * m


def _mlp_kernel(x_ref, w1_ref, w2_ref, w3_ref, b_ref, o_ref):
    """One (tile, 5) batch block -> (tile, 2) output block, in 256-row chunks."""
    # Weights are tiny (<10 KiB total); constant block index => DMA'd once and
    # resident in VMEM for the whole grid.
    w1 = w1_ref[...]                      # (5, 64)   f32
    w2 = w2_ref[...]                      # (64, 32)  f32
    w3 = w3_ref[...]                      # (32, 2)   f32
    h1_dim = w1.shape[1]
    h2_dim = w2.shape[1]
    out_dim = w3.shape[1]

    # Hoist the bias broadcasts out of the chunk loop (JAX does not CSE
    # broadcast_in_dim; with an unrolled loop it would otherwise replicate).
    b1 = jnp.broadcast_to(b_ref[0:1, :h1_dim], (_CHUNK, h1_dim))
    b2 = jnp.broadcast_to(b_ref[8:9, :h2_dim], (_CHUNK, h2_dim))
    b3 = jnp.broadcast_to(b_ref[16:17, :out_dim], (_CHUNK, out_dim))

    n_chunks = x_ref.shape[0] // _CHUNK   # static (tile is a multiple of _CHUNK)

    def body(c, carry):
        r0 = pl.multiple_of(c * _CHUNK, _CHUNK)
        xc = x_ref[pl.ds(r0, _CHUNK), :]                                  # (256, 5)
        # All matmuls are in natural MXU orientation (no transposes anywhere),
        # f32 accumulation; intermediates are (256, 64)/(256, 32) -> no spills.
        h1 = jnp.dot(xc, w1, preferred_element_type=jnp.float32) + b1     # (256, 64)
        h1 = jnp.maximum(h1, 0.0)
        h2 = jnp.dot(h1, w2, preferred_element_type=jnp.float32) + b2     # (256, 32)
        h2 = jnp.maximum(h2, 0.0)
        out = jnp.dot(h2, w3, preferred_element_type=jnp.float32) + b3    # (256, 2)
        o_ref[pl.ds(r0, _CHUNK), :] = out.astype(o_ref.dtype)
        return carry

    lax.fori_loop(0, n_chunks, body, None, unroll=True)


def _pick_tile(batch, tm):
    """Batch tile: multiple of _CHUNK, capped at `tm`, padding-lean, and split
    into >=2 grid steps when there is enough work (v7x megacore sharding)."""
    cap = max(_CHUNK, _round_up(min(tm, batch), _CHUNK))
    n_steps = _ceil_div(batch, cap)
    if n_steps == 1 and batch > _CHUNK:
        n_steps = 2
    return _round_up(_ceil_div(batch, n_steps), _CHUNK)


@functools.partial(jax.jit, static_argnames=("tm",))
def mlp_forward(x, params, *, tm=4096):
    """Fused 3-layer MLP.

    x: (B, 5) float32.  params in PyTorch nn.Linear layout: W (f_out, f_in),
    b (f_out,).  Returns (B, 2) float32.  `tm` is the HBM-facing batch tile
    (sweep 4096..16384; bias larger on v7x).
    """
    w1, b1, w2, b2, w3, b3 = params
    batch, f_in = x.shape
    h1_dim, h2_dim, out_dim = w1.shape[0], w2.shape[0], w3.shape[0]

    tile = _pick_tile(batch, tm)
    grid = (_ceil_div(batch, tile),)      # ragged tail handled by Pallas masking

    # Tiny one-time parameter plumbing (<10 KiB total): weights transposed to
    # (f_in, f_out) for natural MXU orientation; biases packed into one block.
    w1t = w1.T.astype(jnp.float32)                        # (5, 64)
    w2t = w2.T.astype(jnp.float32)                        # (64, 32)
    w3t = w3.T.astype(jnp.float32)                        # (32, 2)
    bmax = max(h1_dim, h2_dim, out_dim)
    b_pack = jnp.zeros((_BIAS_ROWS, bmax), jnp.float32)
    b_pack = (b_pack.at[0, :h1_dim].set(b1.astype(jnp.float32))
                    .at[8, :h2_dim].set(b2.astype(jnp.float32))
                    .at[16, :out_dim].set(b3.astype(jnp.float32)))

    return pl.pallas_call(
        _mlp_kernel,
        out_shape=jax.ShapeDtypeStruct((batch, out_dim), jnp.float32),
        grid_spec=pl.GridSpec(
            grid=grid,
            in_specs=[
                pl.BlockSpec((tile, f_in), lambda i: (i, 0)),   # x batch tile
                pl.BlockSpec(w1t.shape, lambda i: (0, 0)),      # W1^T (5, 64)
                pl.BlockSpec(w2t.shape, lambda i: (0, 0)),      # W2^T (64, 32)
                pl.BlockSpec(w3t.shape, lambda i: (0, 0)),      # W3^T (32, 2)
                pl.BlockSpec(b_pack.shape, lambda i: (0, 0)),   # packed biases
            ],
            out_specs=pl.BlockSpec((tile, out_dim), lambda i: (i, 0)),
        ),
        compiler_params=pltpu.CompilerParams(
            dimension_semantics=("parallel",),   # batch tiles shard across TCs
        ),
    )(x.astype(jnp.float32), w1t, w2t, w3t, b_pack)


def init_params(key):
    """nn.Linear-style init: U(-1/sqrt(fan_in), +1/sqrt(fan_in)).

    Weights stored PyTorch-style (fan_out, fan_in); biases (fan_out,).
    """
    dims = [(5, 64), (64, 32), (32, 2)]
    params = []
    for fan_in, fan_out in dims:
        key, kw, kb = jax.random.split(key, 3)
        bound = 1.0 / jnp.sqrt(float(fan_in))
        w = jax.random.uniform(kw, (fan_out, fan_in), jnp.float32, -bound, bound)
        b = jax.random.uniform(kb, (fan_out,), jnp.float32, -bound, bound)
        params += [w, b]
    return tuple(params)


def mlp_ref(x, params):
    """Pure-JAX f32 reference matching the PyTorch module semantics."""
    w1, b1, w2, b2, w3, b3 = params
    h1 = jnp.maximum(x @ w1.T + b1, 0.0)
    h2 = jnp.maximum(h1 @ w2.T + b2, 0.0)
    return h2 @ w3.T + b3


if __name__ == "__main__":
    key = jax.random.PRNGKey(0)
    k_params, k_x1, k_x2 = jax.random.split(key, 3)
    params = init_params(k_params)

    # Small batch (8): one 256-row tile, single inner chunk, ragged (masked) block.
    x_small = jax.random.normal(k_x1, (8, 5), jnp.float32)
    out_small = jax.block_until_ready(mlp_forward(x_small, params))
    ref_small = mlp_ref(x_small, params)
    assert out_small.shape == (8, 2)
    assert jnp.allclose(out_small, ref_small, atol=5e-2, rtol=5e-2), \
        "mismatch vs reference (small batch)"

    # Ragged multi-tile batch (600 -> tile 512, grid (2,), 2 inner chunks/tile).
    x_big = jax.random.normal(k_x2, (600, 5), jnp.float32)
    out_big = jax.block_until_ready(mlp_forward(x_big, params))
    ref_big = mlp_ref(x_big, params)
    assert out_big.shape == (600, 2)
    assert jnp.allclose(out_big, ref_big, atol=5e-2, rtol=5e-2), \
        "mismatch vs reference (ragged multi-tile batch)"

    print("KERNEL_OK")
</pallas_src>

<mosaic_0001>
module attributes {stable_mosaic.version = 11 : i64} {
  func.func @_mlp_kernel(%arg0: i32, %arg1: memref<256x5xf32, #tpu.memory_space<vmem>>, %arg2: memref<5x64xf32, #tpu.memory_space<vmem>>, %arg3: memref<64x32xf32, #tpu.memory_space<vmem>>, %arg4: memref<32x2xf32, #tpu.memory_space<vmem>>, %arg5: memref<24x64xf32, #tpu.memory_space<vmem>>, %arg6: memref<256x2xf32, #tpu.memory_space<vmem>>) attributes {dimension_semantics = [#tpu.dimension_semantics<parallel>], iteration_bounds = array<i64: 1>, scalar_prefetch = 0 : i64, scratch_operands = 0 : i64, tpu.core_type = #tpu.core_type<tc>, window_params = [{transform_indices = @transform_0, window_bounds = array<i64: 256, 5>}, {pipeline_mode = #tpu.pipeline_mode<synchronous>, transform_indices = @transform_1, window_bounds = array<i64: 5, 64>}, {pipeline_mode = #tpu.pipeline_mode<synchronous>, transform_indices = @transform_2, window_bounds = array<i64: 64, 32>}, {pipeline_mode = #tpu.pipeline_mode<synchronous>, transform_indices = @transform_3, window_bounds = array<i64: 32, 2>}, {pipeline_mode = #tpu.pipeline_mode<synchronous>, transform_indices = @transform_4, window_bounds = array<i64: 24, 64>}, {transform_indices = @transform_5, window_bounds = array<i64: 256, 2>}]} {
    %c0 = arith.constant 0 : index
    %c0_0 = arith.constant 0 : index
    %0 = vector.load %arg2[%c0, %c0_0] : memref<5x64xf32, #tpu.memory_space<vmem>>, vector<5x64xf32>
    %c0_1 = arith.constant 0 : index
    %c0_2 = arith.constant 0 : index
    %1 = vector.load %arg3[%c0_1, %c0_2] : memref<64x32xf32, #tpu.memory_space<vmem>>, vector<64x32xf32>
    %c0_3 = arith.constant 0 : index
    %c0_4 = arith.constant 0 : index
    %2 = vector.load %arg4[%c0_3, %c0_4] : memref<32x2xf32, #tpu.memory_space<vmem>>, vector<32x2xf32>
    %c0_5 = arith.constant 0 : index
    %c0_6 = arith.constant 0 : index
    %3 = vector.load %arg5[%c0_5, %c0_6] : memref<24x64xf32, #tpu.memory_space<vmem>>, vector<1x64xf32>
    %4 = vector.shape_cast %3 : vector<1x64xf32> to vector<1x64xf32>
    %5 = vector.broadcast %4 : vector<1x64xf32> to vector<256x64xf32>
    %c8 = arith.constant 8 : index
    %c0_7 = arith.constant 0 : index
    %6 = vector.load %arg5[%c8, %c0_7] : memref<24x64xf32, #tpu.memory_space<vmem>>, vector<1x32xf32>
    %7 = vector.shape_cast %6 : vector<1x32xf32> to vector<1x32xf32>
    %8 = vector.broadcast %7 : vector<1x32xf32> to vector<256x32xf32>
    %c16 = arith.constant 16 : index
    %c0_8 = arith.constant 0 : index
    %9 = vector.load %arg5[%c16, %c0_8] : memref<24x64xf32, #tpu.memory_space<vmem>>, vector<1x2xf32>
    %10 = vector.shape_cast %9 : vector<1x2xf32> to vector<1x2xf32>
    %11 = vector.broadcast %10 : vector<1x2xf32> to vector<256x2xf32>
    %c0_i32 = arith.constant 0 : i32
    %c256_i32 = arith.constant 256 : i32
    %12 = arith.muli %c0_i32, %c256_i32 : i32
    %13 = tpu.assume_multiple %12, 256 : i32
    %14 = arith.index_cast %13 : i32 to index
    %c0_9 = arith.constant 0 : index
    %15 = vector.load %arg1[%14, %c0_9] : memref<256x5xf32, #tpu.memory_space<vmem>>, vector<256x5xf32>
    %cst = arith.constant dense<0.000000e+00> : vector<256x64xf32>
    %16 = tpu.matmul %15, %0, %cst {dimension_numbers = #tpu.dot_dimension_numbers<[1], [0], [0], [1], [0, 0, 1, 1], [], []>} : vector<256x5xf32>, vector<5x64xf32>, vector<256x64xf32> -> vector<256x64xf32>
    %17 = arith.addf %16, %5 : vector<256x64xf32>
    %cst_10 = arith.constant 0.000000e+00 : f32
    %18 = vector.broadcast %cst_10 : f32 to vector<256x64xf32>
    %19 = arith.maximumf %17, %18 : vector<256x64xf32>
    %cst_11 = arith.constant dense<0.000000e+00> : vector<256x32xf32>
    %20 = tpu.matmul %19, %1, %cst_11 {dimension_numbers = #tpu.dot_dimension_numbers<[1], [0], [0], [1], [0, 0, 1, 1], [], []>} : vector<256x64xf32>, vector<64x32xf32>, vector<256x32xf32> -> vector<256x32xf32>
    %21 = arith.addf %20, %8 : vector<256x32xf32>
    %cst_12 = arith.constant 0.000000e+00 : f32
    %22 = vector.broadcast %cst_12 : f32 to vector<256x32xf32>
    %23 = arith.maximumf %21, %22 : vector<256x32xf32>
    %cst_13 = arith.constant dense<0.000000e+00> : vector<256x2xf32>
    %24 = tpu.matmul %23, %2, %cst_13 {dimension_numbers = #tpu.dot_dimension_numbers<[1], [0], [0], [1], [0, 0, 1, 1], [], []>} : vector<256x32xf32>, vector<32x2xf32>, vector<256x2xf32> -> vector<256x2xf32>
    %25 = arith.addf %24, %11 : vector<256x2xf32>
    %26 = arith.index_cast %13 : i32 to index
    %c0_14 = arith.constant 0 : index
    %27 = vector.load %arg6[%26, %c0_14] : memref<256x2xf32, #tpu.memory_space<vmem>>, vector<256x2xf32>
    tpu.vector_store %arg6[%26, %c0_14], %25 {strides = array<i32>} : memref<256x2xf32, #tpu.memory_space<vmem>>, vector<256x2xf32>,
    %c1_i32 = arith.constant 1 : i32
    return
  }
  func.func @transform_0(%arg0: i32) -> (i32, i32) {
    %c0_i32 = arith.constant 0 : i32
    %c0_i32_0 = arith.constant 0 : i32
    return %arg0, %c0_i32 : i32, i32
  }
  func.func @transform_1(%arg0: i32) -> (i32, i32) {
    %c0_i32 = arith.constant 0 : i32
    %c0_i32_0 = arith.constant 0 : i32
    %c0_i32_1 = arith.constant 0 : i32
    return %c0_i32, %c0_i32_0 : i32, i32
  }
  func.func @transform_2(%arg0: i32) -> (i32, i32) {
    %c0_i32 = arith.constant 0 : i32
    %c0_i32_0 = arith.constant 0 : i32
    %c0_i32_1 = arith.constant 0 : i32
    return %c0_i32, %c0_i32_0 : i32, i32
  }
  func.func @transform_3(%arg0: i32) -> (i32, i32) {
    %c0_i32 = arith.constant 0 : i32
    %c0_i32_0 = arith.constant 0 : i32
    %c0_i32_1 = arith.constant 0 : i32
    return %c0_i32, %c0_i32_0 : i32, i32
  }
  func.func @transform_4(%arg0: i32) -> (i32, i32) {
    %c0_i32 = arith.constant 0 : i32
    %c0_i32_0 = arith.constant 0 : i32
    %c0_i32_1 = arith.constant 0 : i32
    return %c0_i32, %c0_i32_0 : i32, i32
  }
  func.func @transform_5(%arg0: i32) -> (i32, i32) {
    %c0_i32 = arith.constant 0 : i32
    %c0_i32_0 = arith.constant 0 : i32
    return %arg0, %c0_i32 : i32, i32
  }
}

</mosaic_0001>

<llo_original>
// kernel: mlp_forward.1
$region0: #{mlp_forward.1}
  #allocation0 [shape = 'u32[]', space=smem, size = 0x4, offset = 0x4, fixed_abs, tag = 'smem constant byte address 0x4 - core index']
  #allocation1 [shape = 'u32[72,128]{1,0:T(1,128)}', space=vmem, size = 0x9000, scoped, tag = 'internal scratch']
  %s0 = inlined_call_operand.vmem [shape: f32[8,5], index: 0, kind: input, shape index: {}]
  %s1 = inlined_call_operand.vmem [shape: f32[5,64], index: 1, kind: input, shape index: {}]
  %s2 = inlined_call_operand.vmem [shape: f32[64,32], index: 2, kind: input, shape index: {}]
  %s3 = inlined_call_operand.vmem [shape: f32[32,2], index: 3, kind: input, shape index: {}]
  %s4 = inlined_call_operand.vmem [shape: f32[24,64], index: 4, kind: input, shape index: {}]
  %s5 = inlined_call_operand.vmem [shape: f32[8,2], index: 5, kind: output, shape index: {}]
  %s6 = sld [smem:[#allocation0]]
  $region64: #{mlp_forward.1} parent=0
    _
  %s8 = ssub.s32 1, %s6
  %s9 = scalar_select 0, %s8, %s6
  $region1: #{mlp_forward.1} parent=0
    #allocation2 [shape = 'u8[131072]{0}', space=vmem, size = 0x20000, scoped, tag = 'output window, operand 0, single buffered']
    // Predicated region
    $region2: #{mlp_forward.1} parent=1 // pred_check
      _
    $region3: #{mlp_forward.1} parent=1 // pred_check_branch
      %11 = sbr.rel (0) target = $region5
    $region4: #{mlp_forward.1} parent=1 // pred_region
      _
    $region5: #{mlp_forward.1} parent=1 // pred_fallthru
      _
    // Predicated region
    $region6: #{mlp_forward.1} parent=1 // pred_check
      _
    $region7: #{mlp_forward.1} parent=1 // pred_check_branch
      %13 = sbr.rel (0) target = $region9
    $region8: #{mlp_forward.1} parent=1 // pred_region
      _
    $region9: #{mlp_forward.1} parent=1 // pred_fallthru
      _
    // Predicated region
    $region10: #{mlp_forward.1} parent=1 // pred_check
      _
    $region11: #{mlp_forward.1} parent=1 // pred_check_branch
      %15 = sbr.rel (0) target = $region13
    $region12: #{mlp_forward.1} parent=1 // pred_region
      _
    $region13: #{mlp_forward.1} parent=1 // pred_fallthru
      _
    // Predicated region
    $region14: #{mlp_forward.1} parent=1 // pred_check
      _
    $region15: #{mlp_forward.1} parent=1 // pred_check_branch
      %17 = sbr.rel (0) target = $region17
    $region16: #{mlp_forward.1} parent=1 // pred_region
      _
    $region17: #{mlp_forward.1} parent=1 // pred_fallthru
      _
    // Predicated region
    $region18: #{mlp_forward.1} parent=1 // pred_check
      _
    $region19: #{mlp_forward.1} parent=1 // pred_check_branch
      %19 = sbr.rel (0) target = $region21
    $region20: #{mlp_forward.1} parent=1 // pred_region
      _
    $region21: #{mlp_forward.1} parent=1 // pred_fallthru
      _
    %v20 = vld [vmem:[%s1] sm:$0x1f]
    %v21 = vld [vmem:[%s2] sm:$0xff]
    %v22 = vld [vmem:[%s2 + $0x8] sm:$0xff]
    %v23 = vld [vmem:[%s2 + $0x10] sm:$0xff]
    %v24 = vld [vmem:[%s2 + $0x18] sm:$0xff]
    %v25 = vld [vmem:[%s2 + $0x20] sm:$0xff]
    %v26 = vld [vmem:[%s2 + $0x28] sm:$0xff]
    %v27 = vld [vmem:[%s2 + $0x30] sm:$0xff]
    %v28 = vld [vmem:[%s2 + $0x38] sm:$0xff]
    %v29 = vld [vmem:[%s3] sm:$0xff]
    %v30 = vld [vmem:[%s3 + $0x8] sm:$0xff]
    %v31 = vld [vmem:[%s3 + $0x10] sm:$0xff]
    %v32 = vld [vmem:[%s3 + $0x18] sm:$0xff]
    %v33 = vld [vmem:[%s4] sm:$0x1]
    %v34 = vperm.slane %v33, 0
    %v35 = vld [vmem:[%s4 + $0x8] sm:$0x1]
    %v36 = vperm.slane %v35, 0
    %v37 = vld [vmem:[%s4 + $0x10] sm:$0x1]
    %v38 = vperm.slane %v37, 0
    %v39 = vld [vmem:[%s0] sm:$0xff]
    %v40 = vld [vmem:[%s0 + $0x8] sm:$0xff]
    %v41 = vld [vmem:[%s0 + $0x10] sm:$0xff]
    %v42 = vld [vmem:[%s0 + $0x18] sm:$0xff]
    %v43 = vld [vmem:[%s0 + $0x20] sm:$0xff]
    %v44 = vld [vmem:[%s0 + $0x28] sm:$0xff]
    %v45 = vld [vmem:[%s0 + $0x30] sm:$0xff]
    %v46 = vld [vmem:[%s0 + $0x38] sm:$0xff]
    %v47 = vld [vmem:[%s0 + $0x40] sm:$0xff]
    %v48 = vld [vmem:[%s0 + $0x48] sm:$0xff]
    %v49 = vld [vmem:[%s0 + $0x50] sm:$0xff]
    %v50 = vld [vmem:[%s0 + $0x58] sm:$0xff]
    %v51 = vld [vmem:[%s0 + $0x60] sm:$0xff]
    %v52 = vld [vmem:[%s0 + $0x68] sm:$0xff]
    %v53 = vld [vmem:[%s0 + $0x70] sm:$0xff]
    %v54 = vld [vmem:[%s0 + $0x78] sm:$0xff]
    %v55 = vld [vmem:[%s0 + $0x80] sm:$0xff]
    %v56 = vld [vmem:[%s0 + $0x88] sm:$0xff]
    %v57 = vld [vmem:[%s0 + $0x90] sm:$0xff]
    %v58 = vld [vmem:[%s0 + $0x98] sm:$0xff]
    %v59 = vld [vmem:[%s0 + $0xa0] sm:$0xff]
    %v60 = vld [vmem:[%s0 + $0xa8] sm:$0xff]
    %v61 = vld [vmem:[%s0 + $0xb0] sm:$0xff]
    %v62 = vld [vmem:[%s0 + $0xb8] sm:$0xff]
    %v63 = vld [vmem:[%s0 + $0xc0] sm:$0xff]
    %v64 = vld [vmem:[%s0 + $0xc8] sm:$0xff]
    %v65 = vld [vmem:[%s0 + $0xd0] sm:$0xff]
    %v66 = vld [vmem:[%s0 + $0xd8] sm:$0xff]
    %v67 = vld [vmem:[%s0 + $0xe0] sm:$0xff]
    %v68 = vld [vmem:[%s0 + $0xe8] sm:$0xff]
    %v69 = vld [vmem:[%s0 + $0xf0] sm:$0xff]
    %v70 = vld [vmem:[%s0 + $0xf8] sm:$0xff]
    %vm71 = vcmask 39936
    %v73 = vsel %vm71, %v39, 0
    %v76 = vsel %vm71, %v40, 0
    %v79 = vsel %vm71, %v41, 0
    %v82 = vsel %vm71, %v42, 0
    %v85 = vsel %vm71, %v43, 0
    %v88 = vsel %vm71, %v44, 0
    %v91 = vsel %vm71, %v45, 0
    %v94 = vsel %vm71, %v46, 0
    %v97 = vsel %vm71, %v47, 0
    %v100 = vsel %vm71, %v48, 0
    %v103 = vsel %vm71, %v49, 0
    %v106 = vsel %vm71, %v50, 0
    %v109 = vsel %vm71, %v51, 0
    %v112 = vsel %vm71, %v52, 0
    %v115 = vsel %vm71, %v53, 0
    %v118 = vsel %vm71, %v54, 0
    %v121 = vsel %vm71, %v55, 0
    %v124 = vsel %vm71, %v56, 0
    %v127 = vsel %vm71, %v57, 0
    %v130 = vsel %vm71, %v58, 0
    %v133 = vsel %vm71, %v59, 0
    %v136 = vsel %vm71, %v60, 0
    %v139 = vsel %vm71, %v61, 0
    %v142 = vsel %vm71, %v62, 0
    %v145 = vsel %vm71, %v63, 0
    %v148 = vsel %vm71, %v64, 0
    %v151 = vsel %vm71, %v65, 0
    %v154 = vsel %vm71, %v66, 0
    %v157 = vsel %vm71, %v67, 0
    %v160 = vsel %vm71, %v68, 0
    %v163 = vsel %vm71, %v69, 0
    %v166 = vsel %vm71, %v70, 0
    %vm168 = vcmask 1044480
    %v170 = vsel %vm168, %v20, 0
    %172 = vmatpush.msra.mxu0 0.0
    %173 = vmatpush.msra.mxu0 0.0
    %174 = vmatpush.msra.mxu0 0.0
    %175 = vmatpush.msra.mxu0 0.0
    %176 = vmatpush.msra.mxu0 0.0
    %177 = vmatpush.msra.mxu0 0.0
    %178 = vmatpush.msra.mxu0 0.0
    %179 = vmatpush.msra.mxu0 0.0
    %180 = vmatpush.msra.mxu0 0.0
    %181 = vmatpush.msra.mxu0 0.0
    %182 = vmatpush.msra.mxu0 0.0
    %183 = vmatpush.msra.mxu0 0.0
    %184 = vmatpush.msra.mxu0 0.0
    %185 = vmatpush.msra.mxu0 0.0
    %186 = vmatpush.msra.mxu0 0.0
    %187 = vmatpush.msra.mxu0 %v170
    %188 = vmatmul.f32.gmra.mxu0 %v73
    %v189 = vpop.f32.mrf.mxu0
    %v190 = vadd.f32 %v34, %v189
    %191 = vmatmul.f32.gmra.mxu0 %v76
    %v192 = vpop.f32.mrf.mxu0
    %v193 = vadd.f32 %v34, %v192
    %194 = vmatmul.f32.gmra.mxu0 %v79
    %v195 = vpop.f32.mrf.mxu0
    %v196 = vadd.f32 %v34, %v195
    %197 = vmatmul.f32.gmra.mxu0 %v82
    %v198 = vpop.f32.mrf.mxu0
    %v199 = vadd.f32 %v34, %v198
    %200 = vmatmul.f32.gmra.mxu0 %v85
    %v201 = vpop.f32.mrf.mxu0
    %v202 = vadd.f32 %v34, %v201
    %203 = vmatmul.f32.gmra.mxu0 %v88
    %v204 = vpop.f32.mrf.mxu0
    %v205 = vadd.f32 %v34, %v204
    %206 = vmatmul.f32.gmra.mxu0 %v91
    %v207 = vpop.f32.mrf.mxu0
    %v208 = vadd.f32 %v34, %v207
    %209 = vmatmul.f32.gmra.mxu0 %v94
    %v210 = vpop.f32.mrf.mxu0
    %v211 = vadd.f32 %v34, %v210
    %212 = vmatmul.f32.gmra.mxu0 %v97
    %v213 = vpop.f32.mrf.mxu0
    %v214 = vadd.f32 %v34, %v213
    %215 = vmatmul.f32.gmra.mxu0 %v100
    %v216 = vpop.f32.mrf.mxu0
    %v217 = vadd.f32 %v34, %v216
    %218 = vmatmul.f32.gmra.mxu0 %v103
    %v219 = vpop.f32.mrf.mxu0
    %v220 = vadd.f32 %v34, %v219
    %221 = vmatmul.f32.gmra.mxu0 %v106
    %v222 = vpop.f32.mrf.mxu0
    %v223 = vadd.f32 %v34, %v222
    %224 = vmatmul.f32.gmra.mxu0 %v109
    %v225 = vpop.f32.mrf.mxu0
    %v226 = vadd.f32 %v34, %v225
    %227 = vmatmul.f32.gmra.mxu0 %v112
    %v228 = vpop.f32.mrf.mxu0
    %v229 = vadd.f32 %v34, %v228
    %230 = vmatmul.f32.gmra.mxu0 %v115
    %v231 = vpop.f32.mrf.mxu0
    %v232 = vadd.f32 %v34, %v231
    %233 = vmatmul.f32.gmra.mxu0 %v118
    %v234 = vpop.f32.mrf.mxu0
    %v235 = vadd.f32 %v34, %v234
    %236 = vmatmul.f32.gmra.mxu0 %v121
    %v237 = vpop.f32.mrf.mxu0
    %v238 = vadd.f32 %v34, %v237
    %239 = vmatmul.f32.gmra.mxu0 %v124
    %v240 = vpop.f32.mrf.mxu0
    %v241 = vadd.f32 %v34, %v240
    %242 = vmatmul.f32.gmra.mxu0 %v127
    %v243 = vpop.f32.mrf.mxu0
    %v244 = vadd.f32 %v34, %v243
    %245 = vmatmul.f32.gmra.mxu0 %v130
    %v246 = vpop.f32.mrf.mxu0
    %v247 = vadd.f32 %v34, %v246
    %248 = vmatmul.f32.gmra.mxu0 %v133
    %v249 = vpop.f32.mrf.mxu0
    %v250 = vadd.f32 %v34, %v249
    %251 = vmatmul.f32.gmra.mxu0 %v136
    %v252 = vpop.f32.mrf.mxu0
    %v253 = vadd.f32 %v34, %v252
    %254 = vmatmul.f32.gmra.mxu0 %v139
    %v255 = vpop.f32.mrf.mxu0
    %v256 = vadd.f32 %v34, %v255
    %257 = vmatmul.f32.gmra.mxu0 %v142
    %v258 = vpop.f32.mrf.mxu0
    %v259 = vadd.f32 %v34, %v258
    %260 = vmatmul.f32.gmra.mxu0 %v145
    %v261 = vpop.f32.mrf.mxu0
    %v262 = vadd.f32 %v34, %v261
    %263 = vmatmul.f32.gmra.mxu0 %v148
    %v264 = vpop.f32.mrf.mxu0
    %v265 = vadd.f32 %v34, %v264
    %266 = vmatmul.f32.gmra.mxu0 %v151
    %v267 = vpop.f32.mrf.mxu0
    %v268 = vadd.f32 %v34, %v267
    %269 = vmatmul.f32.gmra.mxu0 %v154
    %v270 = vpop.f32.mrf.mxu0
    %v271 = vadd.f32 %v34, %v270
    %272 = vmatmul.f32.gmra.mxu0 %v157
    %v273 = vpop.f32.mrf.mxu0
    %v274 = vadd.f32 %v34, %v273
    %275 = vmatmul.f32.gmra.mxu0 %v160
    %v276 = vpop.f32.mrf.mxu0
    %v277 = vadd.f32 %v34, %v276
    %278 = vmatmul.f32.gmra.mxu0 %v163
    %v279 = vpop.f32.mrf.mxu0
    %v280 = vadd.f32 %v34, %v279
    %281 = vmatmul.f32.gmra.mxu0 %v166
    %v282 = vpop.f32.mrf.mxu0
    %v283 = vadd.f32 %v34, %v282
    %284 = vdwg.mxu0
    %v285 = vmax.f32 %v190, 0.0
    %v286 = vmax.f32 %v193, 0.0
    %v287 = vmax.f32 %v196, 0.0
    %v288 = vmax.f32 %v199, 0.0
    %v289 = vmax.f32 %v202, 0.0
    %v290 = vmax.f32 %v205, 0.0
    %v291 = vmax.f32 %v208, 0.0
    %v292 = vmax.f32 %v211, 0.0
    %v293 = vmax.f32 %v214, 0.0
    %v294 = vmax.f32 %v217, 0.0
    %v295 = vmax.f32 %v220, 0.0
    %v296 = vmax.f32 %v223, 0.0
    %v297 = vmax.f32 %v226, 0.0
    %v298 = vmax.f32 %v229, 0.0
    %v299 = vmax.f32 %v232, 0.0
    %v300 = vmax.f32 %v235, 0.0
    %v301 = vmax.f32 %v238, 0.0
    %v302 = vmax.f32 %v241, 0.0
    %v303 = vmax.f32 %v244, 0.0
    %v304 = vmax.f32 %v247, 0.0
    %v305 = vmax.f32 %v250, 0.0
    %v306 = vmax.f32 %v253, 0.0
    %v307 = vmax.f32 %v256, 0.0
    %v308 = vmax.f32 %v259, 0.0
    %v309 = vmax.f32 %v262, 0.0
    %v310 = vmax.f32 %v265, 0.0
    %v311 = vmax.f32 %v268, 0.0
    %v312 = vmax.f32 %v271, 0.0
    %v313 = vmax.f32 %v274, 0.0
    %v314 = vmax.f32 %v277, 0.0
    %v315 = vmax.f32 %v280, 0.0
    %v316 = vmax.f32 %v283, 0.0
    %vm317 = vcmask 523264
    %v319 = vsel %vm317, %v285, 0
    %v322 = vsel %vm317, %v286, 0
    %v325 = vsel %vm317, %v287, 0
    %v328 = vsel %vm317, %v288, 0
    %v331 = vsel %vm317, %v289, 0
    %v334 = vsel %vm317, %v290, 0
    %v337 = vsel %vm317, %v291, 0
    %v340 = vsel %vm317, %v292, 0
    %v343 = vsel %vm317, %v293, 0
    %v346 = vsel %vm317, %v294, 0
    %v349 = vsel %vm317, %v295, 0
    %v352 = vsel %vm317, %v296, 0
    %v355 = vsel %vm317, %v297, 0
    %v358 = vsel %vm317, %v298, 0
    %v361 = vsel %vm317, %v299, 0
    %v364 = vsel %vm317, %v300, 0
    %v367 = vsel %vm317, %v301, 0
    %v370 = vsel %vm317, %v302, 0
    %v373 = vsel %vm317, %v303, 0
    %v376 = vsel %vm317, %v304, 0
    %v379 = vsel %vm317, %v305, 0
    %v382 = vsel %vm317, %v306, 0
    %v385 = vsel %vm317, %v307, 0
    %v388 = vsel %vm317, %v308, 0
    %v391 = vsel %vm317, %v309, 0
    %v394 = vsel %vm317, %v310, 0
    %v397 = vsel %vm317, %v311, 0
    %v400 = vsel %vm317, %v312, 0
    %v403 = vsel %vm317, %v313, 0
    %v406 = vsel %vm317, %v314, 0
    %v409 = vsel %vm317, %v315, 0
    %v412 = vsel %vm317, %v316, 0
    %414 = vmatpush.msra.mxu0 0.0
    %415 = vmatpush.msra.mxu0 0.0
    %416 = vmatpush.msra.mxu0 0.0
    %417 = vmatpush.msra.mxu0 0.0
    %418 = vmatpush.msra.mxu0 0.0
    %419 = vmatpush.msra.mxu0 0.0
    %420 = vmatpush.msra.mxu0 0.0
    %421 = vmatpush.msra.mxu0 0.0
    %422 = vmatpush.msra.mxu0 %v28
    %423 = vmatpush.msra.mxu0 %v27
    %424 = vmatpush.msra.mxu0 %v26
    %425 = vmatpush.msra.mxu0 %v25
    %426 = vmatpush.msra.mxu0 %v24
    %427 = vmatpush.msra.mxu0 %v23
    %428 = vmatpush.msra.mxu0 %v22
    %429 = vmatpush.msra.mxu0 %v21
    %430 = vmatmul.f32.gmra.mxu0 %v319
    %v431 = vpop.f32.mrf.mxu0
    %v432 = vadd.f32 %v36, %v431
    %433 = vmatmul.f32.gmra.mxu0 %v322
    %v434 = vpop.f32.mrf.mxu0
    %v435 = vadd.f32 %v36, %v434
    %436 = vmatmul.f32.gmra.mxu0 %v325
    %v437 = vpop.f32.mrf.mxu0
    %v438 = vadd.f32 %v36, %v437
    %439 = vmatmul.f32.gmra.mxu0 %v328
    %v440 = vpop.f32.mrf.mxu0
    %v441 = vadd.f32 %v36, %v440
    %442 = vmatmul.f32.gmra.mxu0 %v331
    %v443 = vpop.f32.mrf.mxu0
    %v444 = vadd.f32 %v36, %v443
    %445 = vmatmul.f32.gmra.mxu0 %v334
    %v446 = vpop.f32.mrf.mxu0
    %v447 = vadd.f32 %v36, %v446
    %448 = vmatmul.f32.gmra.mxu0 %v337
    %v449 = vpop.f32.mrf.mxu0
    %v450 = vadd.f32 %v36, %v449
    %451 = vmatmul.f32.gmra.mxu0 %v340
    %v452 = vpop.f32.mrf.mxu0
    %v453 = vadd.f32 %v36, %v452
    %454 = vmatmul.f32.gmra.mxu0 %v343
    %v455 = vpop.f32.mrf.mxu0
    %v456 = vadd.f32 %v36, %v455
    %457 = vmatmul.f32.gmra.mxu0 %v346
    %v458 = vpop.f32.mrf.mxu0
    %v459 = vadd.f32 %v36, %v458
    %460 = vmatmul.f32.gmra.mxu0 %v349
    %v461 = vpop.f32.mrf.mxu0
    %v462 = vadd.f32 %v36, %v461
    %463 = vmatmul.f32.gmra.mxu0 %v352
    %v464 = vpop.f32.mrf.mxu0
    %v465 = vadd.f32 %v36, %v464
    %466 = vmatmul.f32.gmra.mxu0 %v355
    %v467 = vpop.f32.mrf.mxu0
    %v468 = vadd.f32 %v36, %v467
    %469 = vmatmul.f32.gmra.mxu0 %v358
    %v470 = vpop.f32.mrf.mxu0
    %v471 = vadd.f32 %v36, %v470
    %472 = vmatmul.f32.gmra.mxu0 %v361
    %v473 = vpop.f32.mrf.mxu0
    %v474 = vadd.f32 %v36, %v473
    %475 = vmatmul.f32.gmra.mxu0 %v364
    %v476 = vpop.f32.mrf.mxu0
    %v477 = vadd.f32 %v36, %v476
    %478 = vmatmul.f32.gmra.mxu0 %v367
    %v479 = vpop.f32.mrf.mxu0
    %v480 = vadd.f32 %v36, %v479
    %481 = vmatmul.f32.gmra.mxu0 %v370
    %v482 = vpop.f32.mrf.mxu0
    %v483 = vadd.f32 %v36, %v482
    %484 = vmatmul.f32.gmra.mxu0 %v373
    %v485 = vpop.f32.mrf.mxu0
    %v486 = vadd.f32 %v36, %v485
    %487 = vmatmul.f32.gmra.mxu0 %v376
    %v488 = vpop.f32.mrf.mxu0
    %v489 = vadd.f32 %v36, %v488
    %490 = vmatmul.f32.gmra.mxu0 %v379
    %v491 = vpop.f32.mrf.mxu0
    %v492 = vadd.f32 %v36, %v491
    %493 = vmatmul.f32.gmra.mxu0 %v382
    %v494 = vpop.f32.mrf.mxu0
    %v495 = vadd.f32 %v36, %v494
    %496 = vmatmul.f32.gmra.mxu0 %v385
    %v497 = vpop.f32.mrf.mxu0
    %v498 = vadd.f32 %v36, %v497
    %499 = vmatmul.f32.gmra.mxu0 %v388
    %v500 = vpop.f32.mrf.mxu0
    %v501 = vadd.f32 %v36, %v500
    %502 = vmatmul.f32.gmra.mxu0 %v391
    %v503 = vpop.f32.mrf.mxu0
    %v504 = vadd.f32 %v36, %v503
    %505 = vmatmul.f32.gmra.mxu0 %v394
    %v506 = vpop.f32.mrf.mxu0
    %v507 = vadd.f32 %v36, %v506
    %508 = vmatmul.f32.gmra.mxu0 %v397
    %v509 = vpop.f32.mrf.mxu0
    %v510 = vadd.f32 %v36, %v509
    %511 = vmatmul.f32.gmra.mxu0 %v400
    %v512 = vpop.f32.mrf.mxu0
    %v513 = vadd.f32 %v36, %v512
    %514 = vmatmul.f32.gmra.mxu0 %v403
    %v515 = vpop.f32.mrf.mxu0
    %v516 = vadd.f32 %v36, %v515
    %517 = vmatmul.f32.gmra.mxu0 %v406
    %v518 = vpop.f32.mrf.mxu0
    %v519 = vadd.f32 %v36, %v518
    %520 = vmatmul.f32.gmra.mxu0 %v409
    %v521 = vpop.f32.mrf.mxu0
    %v522 = vadd.f32 %v36, %v521
    %523 = vmatmul.f32.gmra.mxu0 %v412
    %v524 = vpop.f32.mrf.mxu0
    %v525 = vadd.f32 %v36, %v524
    %526 = vdwg.mxu0
    %v527 = vmax.f32 %v432, 0.0
    %v528 = vmax.f32 %v435, 0.0
    %v529 = vmax.f32 %v438, 0.0
    %v530 = vmax.f32 %v441, 0.0
    %v531 = vmax.f32 %v444, 0.0
    %v532 = vmax.f32 %v447, 0.0
    %v533 = vmax.f32 %v450, 0.0
    %v534 = vmax.f32 %v453, 0.0
    %v535 = vmax.f32 %v456, 0.0
    %v536 = vmax.f32 %v459, 0.0
    %v537 = vmax.f32 %v462, 0.0
    %v538 = vmax.f32 %v465, 0.0
    %v539 = vmax.f32 %v468, 0.0
    %v540 = vmax.f32 %v471, 0.0
    %v541 = vmax.f32 %v474, 0.0
    %v542 = vmax.f32 %v477, 0.0
    %v543 = vmax.f32 %v480, 0.0
    %v544 = vmax.f32 %v483, 0.0
    %v545 = vmax.f32 %v486, 0.0
    %v546 = vmax.f32 %v489, 0.0
    %v547 = vmax.f32 %v492, 0.0
    %v548 = vmax.f32 %v495, 0.0
    %v549 = vmax.f32 %v498, 0.0
    %v550 = vmax.f32 %v501, 0.0
    %v551 = vmax.f32 %v504, 0.0
    %v552 = vmax.f32 %v507, 0.0
    %v553 = vmax.f32 %v510, 0.0
    %v554 = vmax.f32 %v513, 0.0
    %v555 = vmax.f32 %v516, 0.0
    %v556 = vmax.f32 %v519, 0.0
    %v557 = vmax.f32 %v522, 0.0
    %v558 = vmax.f32 %v525, 0.0
    %vm559 = vcmask 261120
    %v561 = vsel %vm559, %v527, 0
    %v564 = vsel %vm559, %v528, 0
    %v567 = vsel %vm559, %v529, 0
    %v570 = vsel %vm559, %v530, 0
    %v573 = vsel %vm559, %v531, 0
    %v576 = vsel %vm559, %v532, 0
    %v579 = vsel %vm559, %v533, 0
    %v582 = vsel %vm559, %v534, 0
    %v585 = vsel %vm559, %v535, 0
    %v588 = vsel %vm559, %v536, 0
    %v591 = vsel %vm559, %v537, 0
    %v594 = vsel %vm559, %v538, 0
    %v597 = vsel %vm559, %v539, 0
    %v600 = vsel %vm559, %v540, 0
    %v603 = vsel %vm559, %v541, 0
    %v606 = vsel %vm559, %v542, 0
    %v609 = vsel %vm559, %v543, 0
    %v612 = vsel %vm559, %v544, 0
    %v615 = vsel %vm559, %v545, 0
    %v618 = vsel %vm559, %v546, 0
    %v621 = vsel %vm559, %v547, 0
    %v624 = vsel %vm559, %v548, 0
    %v627 = vsel %vm559, %v549, 0
    %v630 = vsel %vm559, %v550, 0
    %v633 = vsel %vm559, %v551, 0
    %v636 = vsel %vm559, %v552, 0
    %v639 = vsel %vm559, %v553, 0
    %v642 = vsel %vm559, %v554, 0
    %v645 = vsel %vm559, %v555, 0
    %v648 = vsel %vm559, %v556, 0
    %v651 = vsel %vm559, %v557, 0
    %v654 = vsel %vm559, %v558, 0
    %656 = vmatpush.msra.mxu0 0.0
    %657 = vmatpush.msra.mxu0 0.0
    %658 = vmatpush.msra.mxu0 0.0
    %659 = vmatpush.msra.mxu0 0.0
    %660 = vmatpush.msra.mxu0 0.0
    %661 = vmatpush.msra.mxu0 0.0
    %662 = vmatpush.msra.mxu0 0.0
    %663 = vmatpush.msra.mxu0 0.0
    %664 = vmatpush.msra.mxu0 0.0
    %665 = vmatpush.msra.mxu0 0.0
    %666 = vmatpush.msra.mxu0 0.0
    %667 = vmatpush.msra.mxu0 0.0
    %668 = vmatpush.msra.mxu0 %v32
    %669 = vmatpush.msra.mxu0 %v31
    %670 = vmatpush.msra.mxu0 %v30
    %671 = vmatpush.msra.mxu0 %v29
    %672 = vmatmul.f32.gmra.mxu0 %v561
    %v673 = vpop.f32.mrf.mxu0
    %v674 = vadd.f32 %v38, %v673
    %675 = vmatmul.f32.gmra.mxu0 %v564
    %v676 = vpop.f32.mrf.mxu0
    %v677 = vadd.f32 %v38, %v676
    %678 = vmatmul.f32.gmra.mxu0 %v567
    %v679 = vpop.f32.mrf.mxu0
    %v680 = vadd.f32 %v38, %v679
    %681 = vmatmul.f32.gmra.mxu0 %v570
    %v682 = vpop.f32.mrf.mxu0
    %v683 = vadd.f32 %v38, %v682
    %684 = vmatmul.f32.gmra.mxu0 %v573
    %v685 = vpop.f32.mrf.mxu0
    %v686 = vadd.f32 %v38, %v685
    %687 = vmatmul.f32.gmra.mxu0 %v576
    %v688 = vpop.f32.mrf.mxu0
    %v689 = vadd.f32 %v38, %v688
    %690 = vmatmul.f32.gmra.mxu0 %v579
    %v691 = vpop.f32.mrf.mxu0
    %v692 = vadd.f32 %v38, %v691
    %693 = vmatmul.f32.gmra.mxu0 %v582
    %v694 = vpop.f32.mrf.mxu0
    %v695 = vadd.f32 %v38, %v694
    %696 = vmatmul.f32.gmra.mxu0 %v585
    %v697 = vpop.f32.mrf.mxu0
    %v698 = vadd.f32 %v38, %v697
    %699 = vmatmul.f32.gmra.mxu0 %v588
    %v700 = vpop.f32.mrf.mxu0
    %v701 = vadd.f32 %v38, %v700
    %702 = vmatmul.f32.gmra.mxu0 %v591
    %v703 = vpop.f32.mrf.mxu0
    %v704 = vadd.f32 %v38, %v703
    %705 = vmatmul.f32.gmra.mxu0 %v594
    %v706 = vpop.f32.mrf.mxu0
    %v707 = vadd.f32 %v38, %v706
    %708 = vmatmul.f32.gmra.mxu0 %v597
    %v709 = vpop.f32.mrf.mxu0
    %v710 = vadd.f32 %v38, %v709
    %711 = vmatmul.f32.gmra.mxu0 %v600
    %v712 = vpop.f32.mrf.mxu0
    %v713 = vadd.f32 %v38, %v712
    %714 = vmatmul.f32.gmra.mxu0 %v603
    %v715 = vpop.f32.mrf.mxu0
    %v716 = vadd.f32 %v38, %v715
    %717 = vmatmul.f32.gmra.mxu0 %v606
    %v718 = vpop.f32.mrf.mxu0
    %v719 = vadd.f32 %v38, %v718
    %720 = vmatmul.f32.gmra.mxu0 %v609
    %v721 = vpop.f32.mrf.mxu0
    %v722 = vadd.f32 %v38, %v721
    %723 = vmatmul.f32.gmra.mxu0 %v612
    %v724 = vpop.f32.mrf.mxu0
    %v725 = vadd.f32 %v38, %v724
    %726 = vmatmul.f32.gmra.mxu0 %v615
    %v727 = vpop.f32.mrf.mxu0
    %v728 = vadd.f32 %v38, %v727
    %729 = vmatmul.f32.gmra.mxu0 %v618
    %v730 = vpop.f32.mrf.mxu0
    %v731 = vadd.f32 %v38, %v730
    %732 = vmatmul.f32.gmra.mxu0 %v621
    %v733 = vpop.f32.mrf.mxu0
    %v734 = vadd.f32 %v38, %v733
    %735 = vmatmul.f32.gmra.mxu0 %v624
    %v736 = vpop.f32.mrf.mxu0
    %v737 = vadd.f32 %v38, %v736
    %738 = vmatmul.f32.gmra.mxu0 %v627
    %v739 = vpop.f32.mrf.mxu0
    %v740 = vadd.f32 %v38, %v739
    %741 = vmatmul.f32.gmra.mxu0 %v630
    %v742 = vpop.f32.mrf.mxu0
    %v743 = vadd.f32 %v38, %v742
    %744 = vmatmul.f32.gmra.mxu0 %v633
    %v745 = vpop.f32.mrf.mxu0
    %v746 = vadd.f32 %v38, %v745
    %747 = vmatmul.f32.gmra.mxu0 %v636
    %v748 = vpop.f32.mrf.mxu0
    %v749 = vadd.f32 %v38, %v748
    %750 = vmatmul.f32.gmra.mxu0 %v639
    %v751 = vpop.f32.mrf.mxu0
    %v752 = vadd.f32 %v38, %v751
    %753 = vmatmul.f32.gmra.mxu0 %v642
    %v754 = vpop.f32.mrf.mxu0
    %v755 = vadd.f32 %v38, %v754
    %756 = vmatmul.f32.gmra.mxu0 %v645
    %v757 = vpop.f32.mrf.mxu0
    %v758 = vadd.f32 %v38, %v757
    %759 = vmatmul.f32.gmra.mxu0 %v648
    %v760 = vpop.f32.mrf.mxu0
    %v761 = vadd.f32 %v38, %v760
    %762 = vmatmul.f32.gmra.mxu0 %v651
    %v763 = vpop.f32.mrf.mxu0
    %v764 = vadd.f32 %v38, %v763
    %765 = vmatmul.f32.gmra.mxu0 %v654
    %v766 = vpop.f32.mrf.mxu0
    %v767 = vadd.f32 %v38, %v766
    %768 = vdwg.mxu0
    %vm769 = vcmask 15360
    %770 = vst.msk [vmem:[#allocation2] sm:$0xff] %vm769, %v674
    %771 = vst.msk [vmem:[#allocation2 + $0x8] sm:$0xff] %vm769, %v677
    %772 = vst.msk [vmem:[#allocation2 + $0x10] sm:$0xff] %vm769, %v680
    %773 = vst.msk [vmem:[#allocation2 + $0x18] sm:$0xff] %vm769, %v683
    %774 = vst.msk [vmem:[#allocation2 + $0x20] sm:$0xff] %vm769, %v686
    %775 = vst.msk [vmem:[#allocation2 + $0x28] sm:$0xff] %vm769, %v689
    %776 = vst.msk [vmem:[#allocation2 + $0x30] sm:$0xff] %vm769, %v692
    %777 = vst.msk [vmem:[#allocation2 + $0x38] sm:$0xff] %vm769, %v695
    %778 = vst.msk [vmem:[#allocation2 + $0x40] sm:$0xff] %vm769, %v698
    %779 = vst.msk [vmem:[#allocation2 + $0x48] sm:$0xff] %vm769, %v701
    %780 = vst.msk [vmem:[#allocation2 + $0x50] sm:$0xff] %vm769, %v704
    %781 = vst.msk [vmem:[#allocation2 + $0x58] sm:$0xff] %vm769, %v707
    %782 = vst.msk [vmem:[#allocation2 + $0x60] sm:$0xff] %vm769, %v710
    %783 = vst.msk [vmem:[#allocation2 + $0x68] sm:$0xff] %vm769, %v713
    %784 = vst.msk [vmem:[#allocation2 + $0x70] sm:$0xff] %vm769, %v716
    %785 = vst.msk [vmem:[#allocation2 + $0x78] sm:$0xff] %vm769, %v719
    %786 = vst.msk [vmem:[#allocation2 + $0x80] sm:$0xff] %vm769, %v722
    %787 = vst.msk [vmem:[#allocation2 + $0x88] sm:$0xff] %vm769, %v725
    %788 = vst.msk [vmem:[#allocation2 + $0x90] sm:$0xff] %vm769, %v728
    %789 = vst.msk [vmem:[#allocation2 + $0x98] sm:$0xff] %vm769, %v731
    %790 = vst.msk [vmem:[#allocation2 + $0xa0] sm:$0xff] %vm769, %v734
    %791 = vst.msk [vmem:[#allocation2 + $0xa8] sm:$0xff] %vm769, %v737
    %792 = vst.msk [vmem:[#allocation2 + $0xb0] sm:$0xff] %vm769, %v740
    %793 = vst.msk [vmem:[#allocation2 + $0xb8] sm:$0xff] %vm769, %v743
    %794 = vst.msk [vmem:[#allocation2 + $0xc0] sm:$0xff] %vm769, %v746
    %795 = vst.msk [vmem:[#allocation2 + $0xc8] sm:$0xff] %vm769, %v749
    %796 = vst.msk [vmem:[#allocation2 + $0xd0] sm:$0xff] %vm769, %v752
    %797 = vst.msk [vmem:[#allocation2 + $0xd8] sm:$0xff] %vm769, %v755
    %798 = vst.msk [vmem:[#allocation2 + $0xe0] sm:$0xff] %vm769, %v758
    %799 = vst.msk [vmem:[#allocation2 + $0xe8] sm:$0xff] %vm769, %v761
    %800 = vst.msk [vmem:[#allocation2 + $0xf0] sm:$0xff] %vm769, %v764
    %801 = vst.msk [vmem:[#allocation2 + $0xf8] sm:$0xff] %vm769, %v767
    // Predicated region
    $region22: #{mlp_forward.1} parent=1 // pred_check
      _
    $region23: #{mlp_forward.1} parent=1 // pred_check_branch
      %803 = sbr.rel (0) target = $region25
    $region24: #{mlp_forward.1} parent=1 // pred_region
      // Predicated region
      $region26: #{mlp_forward.1} parent=24 // pred_check
        _
      $region27: #{mlp_forward.1} parent=24 // pred_check_branch
        %805 = sbr.rel (0) target = $region29
      $region28: #{mlp_forward.1} parent=24 // pred_region
        // Predicated region
        $region30: #{mlp_forward.1} parent=28 // pred_check
          _
        $region31: #{mlp_forward.1} parent=28 // pred_check_branch
          %807 = sbr.rel (0) target = $region33
        $region32: #{mlp_forward.1} parent=28 // pred_region
          // Predicated region
          $region45: #{mlp_forward.1} parent=32 // pred_check
            _
          $region46: #{mlp_forward.1} parent=32 // pred_check_branch
            %823 = sbr.rel (0) target = $region48
          $region47: #{mlp_forward.1} parent=32 // pred_region
            loop: start=0, step=1, limit=1
            $region49: #{mlp_forward.1} parent=47 // loop_pre_header
              _
            $region50: #{mlp_forward.1} parent=47 // loop_header
              %s825 = sphi 0, %s829
              %p826 = scmp.ge.s32.totalorder %s825, 1
              %s830 = sphi [#allocation2], [#allocation2]
              %s831 = sphi %s5, %s5
            $region51: #{mlp_forward.1} parent=47 // loop_header_branch
              %828 = sbr.rel (%p826) target = $region55
            $region52: #{mlp_forward.1} parent=47 // loop_body
              %v832 = vld [vmem:[%s830] sm:$0xff]
              %833 = vst [vmem:[%s831] sm:$0xff] %v832
            $region53: #{mlp_forward.1} parent=47 // loop_footer
              %s829 = sadd.s32 1, %s825
            $region54: #{mlp_forward.1} parent=47 // loop_footer_branch
              %824 = sbr.rel target = $region50
            $region55: #{mlp_forward.1} parent=47 // loop_exit
              _
          $region48: #{mlp_forward.1} parent=32 // pred_fallthru
            _
          // Predicated region
          $region56: #{mlp_forward.1} parent=32 // pred_check
            _
          $region57: #{mlp_forward.1} parent=32 // pred_check_branch
            %835 = sbr.rel target = $region59
          $region58: #{mlp_forward.1} parent=32 // pred_region
            _
          $region59: #{mlp_forward.1} parent=32 // pred_fallthru
            _
        $region33: #{mlp_forward.1} parent=28 // pred_fallthru
          _
        // Predicated region
        $region34: #{mlp_forward.1} parent=28 // pred_check
          _
        $region35: #{mlp_forward.1} parent=28 // pred_check_branch
          %809 = sbr.rel target = $region37
        $region36: #{mlp_forward.1} parent=28 // pred_region
          %s811 = ssub.s32 256, 1
          loop: start=0, step=1, limit=1
          $region38: #{mlp_forward.1} parent=36 // loop_pre_header
            _
          $region39: #{mlp_forward.1} parent=36 // loop_header
            %s813 = sphi 0, %s817
            %p814 = scmp.ge.s32.totalorder %s813, 1
            %s818 = sphi [#allocation2], [#allocation2]
            %s819 = sphi %s5, %s5
          $region40: #{mlp_forward.1} parent=36 // loop_header_branch
            %816 = sbr.rel (%p814) target = $region44
          $region41: #{mlp_forward.1} parent=36 // loop_body
            %v820 = vld [vmem:[%s818] sm:%s811]
            %821 = vst [vmem:[%s819] sm:%s811] %v820
          $region42: #{mlp_forward.1} parent=36 // loop_footer
            %s817 = sadd.s32 1, %s813
          $region43: #{mlp_forward.1} parent=36 // loop_footer_branch
            %812 = sbr.rel target = $region39
          $region44: #{mlp_forward.1} parent=36 // loop_exit
            _
        $region37: #{mlp_forward.1} parent=28 // pred_fallthru
          _
      $region29: #{mlp_forward.1} parent=24 // pred_fallthru
        _
      %836 = vnop
    $region25: #{mlp_forward.1} parent=1 // pred_fallthru
      _
    // Predicated region
    $region60: #{mlp_forward.1} parent=1 // pred_check
      _
    $region61: #{mlp_forward.1} parent=1 // pred_check_branch
      %838 = sbr.rel (0) target = $region63
    $region62: #{mlp_forward.1} parent=1 // pred_region
      _
    $region63: #{mlp_forward.1} parent=1 // pred_fallthru
      _

</llo_original>
